<compile_context>
chip_gen: v7x
topology: tpu7x:2x2x1
jax: 0.10.0
libtpu: 0.0.40
codegen_flags: <defaults>
</compile_context>

<pallas_src>
import functools

import jax
import jax.numpy as jnp
from jax.experimental import pallas as pl
from jax.experimental.pallas import tpu as pltpu


def _round_up(x, m):
    return ((x + m - 1) // m) * m


def _policy_kernel(x_ref, w1_ref, b1_ref, w2_ref, b2_ref, wh_ref, bh_ref,
                   out_ref, *, obs_dim, action_dim, skill_scale):
    # x = [obs || skill] (raw f32); apply tanh(skill * scale) to skill cols only.
    x = x_ref[...]
    col = jax.lax.broadcasted_iota(jnp.int32, x.shape, 1)
    x = jnp.where(col >= obs_dim, jnp.tanh(x * skill_scale), x)

    # fc[0]: Linear(obs+skill, 256) + ReLU.  bf16 x bf16 MXU, f32 accumulate;
    # bias add / ReLU stay f32 (v5e has no bf16 VPU path).
    h = jnp.dot(x.astype(jnp.bfloat16), w1_ref[...],
                preferred_element_type=jnp.float32) + b1_ref[...]
    h = jnp.maximum(h, 0.0)

    # fc[2]: Linear(256, 256) + ReLU
    h = jnp.dot(h.astype(jnp.bfloat16), w2_ref[...],
                preferred_element_type=jnp.float32) + b2_ref[...]
    h = jnp.maximum(h, 0.0)

    # fused heads: [mean || log_std || zero-pad] in one lane-dense matmul
    head = jnp.dot(h.astype(jnp.bfloat16), wh_ref[...],
                   preferred_element_type=jnp.float32) + bh_ref[...]

    # cols >= action_dim: std = exp(clamp(log_std, -20, 2)); cols < action_dim:
    # raw mean.  Padded cols become exp(0)=1 and are sliced away in the wrapper.
    hcol = jax.lax.broadcasted_iota(jnp.int32, head.shape, 1)
    std = jnp.exp(jnp.clip(head, -20.0, 2.0))
    out_ref[...] = jnp.where(hcol >= action_dim, std, head).astype(out_ref.dtype)


def gaussian_skill_policy(obs, skill, params, *, tile_b=2048, skill_scale=5.0):
    """obs: [B, obs_dim], skill: [B, skill_dim] -> (mean [B, A], std [B, A])."""
    B, obs_dim = obs.shape
    _, skill_dim = skill.shape
    in_dim = obs_dim + skill_dim
    hidden = params["w2"].shape[0]
    action_dim = params["action_dim"]
    head_dim = params["wh"].shape[1]          # 128-lane-padded fused head width

    # Pure-layout concat in the wrapper; single K=in_dim first-layer matmul.
    x = jnp.concatenate([obs, skill], axis=-1).astype(jnp.float32)

    # Batch tiling: TB rows per grid step; weights stay VMEM-resident.
    tile_b = max(8, _round_up(tile_b, 8))
    TB = min(tile_b, _round_up(B, 8))
    # v7x has 2 TensorCores; give the "parallel" batch axis >= 2 grid steps
    # whenever the batch is big enough to split into >=8-row blocks.
    if pl.cdiv(B, TB) < 2 and B > 8:
        TB = max(8, _round_up(pl.cdiv(B, 2), 8))
    n_blocks = pl.cdiv(B, TB)
    B_pad = n_blocks * TB
    if B_pad != B:
        x = jnp.pad(x, ((0, B_pad - B), (0, 0)))

    kernel = functools.partial(_policy_kernel, obs_dim=obs_dim,
                               action_dim=action_dim, skill_scale=skill_scale)

    weight_bytes = 2 * (params["w1"].size + params["w2"].size + params["wh"].size)
    bias_bytes = 4 * (params["b1"].size + params["b2"].size + params["bh"].size)
    cost = pl.CostEstimate(
        flops=2 * B_pad * (in_dim * hidden + hidden * hidden + hidden * head_dim),
        transcendentals=B_pad * (in_dim + head_dim),
        bytes_accessed=weight_bytes + bias_bytes
                       + 4 * x.size + 4 * B_pad * head_dim,
    )

    def resident(shape):
        # Constant block index: DMA'd once, stays in VMEM across grid steps.
        return pl.BlockSpec(shape, lambda i: (0, 0))

    packed = pl.pallas_call(
        kernel,
        out_shape=jax.ShapeDtypeStruct((B_pad, head_dim), jnp.float32),
        grid=(n_blocks,),
        in_specs=[
            pl.BlockSpec((TB, in_dim), lambda i: (i, 0)),   # activation tile
            resident(params["w1"].shape),
            resident(params["b1"].shape),
            resident(params["w2"].shape),
            resident(params["b2"].shape),
            resident(params["wh"].shape),
            resident(params["bh"].shape),
        ],
        out_specs=pl.BlockSpec((TB, head_dim), lambda i: (i, 0)),
        compiler_params=pltpu.CompilerParams(
            dimension_semantics=("parallel",),   # v7x: split batch over 2 TCs
            vmem_limit_bytes=32 << 20,           # safe on v7x (64 MiB physical)
        ),
        cost_estimate=cost,
    )(x, params["w1"], params["b1"], params["w2"], params["b2"],
      params["wh"], params["bh"])

    packed = packed[:B, :2 * action_dim]
    return packed[:, :action_dim], packed[:, action_dim:]


def init_params(key, obs_dim, skill_dim, action_dim, hidden=256):
    """PyTorch-Linear-style init U(-1/sqrt(fan_in), 1/sqrt(fan_in)).
    Weights stored [in, out] in bf16; biases f32.  mean/log_std heads fused
    and zero-padded to a 128-lane head: wh = [wm || ws || 0], bh = [bm || bs || 0]."""
    ks = jax.random.split(key, 8)
    in1 = obs_dim + skill_dim

    def lin(kw, kb, fan_in, fan_out):
        bound = 1.0 / jnp.sqrt(fan_in)
        w = jax.random.uniform(kw, (fan_in, fan_out), jnp.float32, -bound, bound)
        b = jax.random.uniform(kb, (1, fan_out), jnp.float32, -bound, bound)
        return w, b

    w1, b1 = lin(ks[0], ks[1], in1, hidden)
    w2, b2 = lin(ks[2], ks[3], hidden, hidden)
    wm, bm = lin(ks[4], ks[5], hidden, action_dim)
    ws, bs = lin(ks[6], ks[7], hidden, action_dim)

    head_dim = max(128, _round_up(2 * action_dim, 128))
    wh = jnp.pad(jnp.concatenate([wm, ws], axis=1),
                 ((0, 0), (0, head_dim - 2 * action_dim)))
    bh = jnp.pad(jnp.concatenate([bm, bs], axis=1),
                 ((0, 0), (0, head_dim - 2 * action_dim)))

    return {
        "w1": w1.astype(jnp.bfloat16),
        "b1": b1,
        "w2": w2.astype(jnp.bfloat16),
        "b2": b2,
        "wh": wh.astype(jnp.bfloat16),
        "bh": bh,
        "action_dim": action_dim,
    }


def reference_forward(obs, skill, params, skill_scale=5.0):
    """Pure-JAX reference mirroring the kernel's numerics (bf16 matmul
    operands, f32 accumulation and f32 elementwise math)."""
    action_dim = params["action_dim"]
    sk = jnp.tanh(skill * skill_scale)
    x = jnp.concatenate([obs, sk], axis=-1).astype(jnp.bfloat16)
    h = jnp.maximum(jnp.dot(x, params["w1"],
                            preferred_element_type=jnp.float32) + params["b1"], 0.0)
    h = jnp.maximum(jnp.dot(h.astype(jnp.bfloat16), params["w2"],
                            preferred_element_type=jnp.float32) + params["b2"], 0.0)
    head = jnp.dot(h.astype(jnp.bfloat16), params["wh"],
                   preferred_element_type=jnp.float32) + params["bh"]
    head = head[:, :2 * action_dim]
    mean = head[:, :action_dim]
    log_std = jnp.clip(head[:, action_dim:], -20.0, 2.0)
    return mean, jnp.exp(log_std)


if __name__ == "__main__":
    key = jax.random.PRNGKey(0)
    k_obs, k_skill, k_params = jax.random.split(key, 3)

    B, obs_dim, skill_dim, action_dim = 2, 24, 8, 8

    obs = jax.random.normal(k_obs, (B, obs_dim), jnp.float32)
    skill = jax.random.normal(k_skill, (B, skill_dim), jnp.float32)
    params = init_params(k_params, obs_dim, skill_dim, action_dim)

    mean, std = gaussian_skill_policy(obs, skill, params)
    jax.block_until_ready((mean, std))

    ref_mean, ref_std = reference_forward(obs, skill, params)
    assert mean.shape == (B, action_dim) and std.shape == (B, action_dim)
    assert jnp.allclose(mean, ref_mean, atol=1e-3, rtol=1e-3)
    assert jnp.allclose(std, ref_std, atol=1e-3, rtol=1e-3)

    print("KERNEL_OK")
</pallas_src>

<mosaic_0001>
module attributes {stable_mosaic.version = 11 : i64} {
  func.func @_policy_kernel(%arg0: i32, %arg1: memref<8x32xf32, #tpu.memory_space<vmem>>, %arg2: memref<32x256xbf16, #tpu.memory_space<vmem>>, %arg3: memref<1x256xf32, #tpu.memory_space<vmem>>, %arg4: memref<256x256xbf16, #tpu.memory_space<vmem>>, %arg5: memref<1x256xf32, #tpu.memory_space<vmem>>, %arg6: memref<256x128xbf16, #tpu.memory_space<vmem>>, %arg7: memref<1x128xf32, #tpu.memory_space<vmem>>, %arg8: memref<8x128xf32, #tpu.memory_space<vmem>>) attributes {dimension_semantics = [#tpu.dimension_semantics<parallel>], iteration_bounds = array<i64: 1>, scalar_prefetch = 0 : i64, scratch_operands = 0 : i64, tpu.core_type = #tpu.core_type<tc>, window_params = [{transform_indices = @transform_0, window_bounds = array<i64: 8, 32>}, {pipeline_mode = #tpu.pipeline_mode<synchronous>, transform_indices = @transform_1, window_bounds = array<i64: 32, 256>}, {pipeline_mode = #tpu.pipeline_mode<synchronous>, transform_indices = @transform_2, window_bounds = array<i64: 1, 256>}, {pipeline_mode = #tpu.pipeline_mode<synchronous>, transform_indices = @transform_3, window_bounds = array<i64: 256, 256>}, {pipeline_mode = #tpu.pipeline_mode<synchronous>, transform_indices = @transform_4, window_bounds = array<i64: 1, 256>}, {pipeline_mode = #tpu.pipeline_mode<synchronous>, transform_indices = @transform_5, window_bounds = array<i64: 256, 128>}, {pipeline_mode = #tpu.pipeline_mode<synchronous>, transform_indices = @transform_6, window_bounds = array<i64: 1, 128>}, {transform_indices = @transform_7, window_bounds = array<i64: 8, 128>}]} {
    %c0 = arith.constant 0 : index
    %c0_0 = arith.constant 0 : index
    %0 = vector.load %arg1[%c0, %c0_0] : memref<8x32xf32, #tpu.memory_space<vmem>>, vector<8x32xf32>
    %1 = tpu.iota {dimensions = array<i32: 1>} : vector<8x32xi32>
    %c24_i32 = arith.constant 24 : i32
    %2 = vector.broadcast %c24_i32 : i32 to vector<8x32xi32>
    %3 = arith.cmpi sge, %1, %2 : vector<8x32xi32>
    %cst = arith.constant 5.000000e+00 : f32
    %4 = vector.broadcast %cst : f32 to vector<8x32xf32>
    %5 = arith.mulf %0, %4 : vector<8x32xf32>
    %6 = math.tanh %5 : vector<8x32xf32>
    %7 = arith.select %3, %6, %0 : vector<8x32xi1>, vector<8x32xf32>
    %8 = arith.truncf %7 : vector<8x32xf32> to vector<8x32xbf16>
    %c0_1 = arith.constant 0 : index
    %c0_2 = arith.constant 0 : index
    %9 = vector.load %arg2[%c0_1, %c0_2] : memref<32x256xbf16, #tpu.memory_space<vmem>>, vector<32x256xbf16>
    %cst_3 = arith.constant dense<0.000000e+00> : vector<8x256xf32>
    %10 = tpu.matmul %8, %9, %cst_3 {dimension_numbers = #tpu.dot_dimension_numbers<[1], [0], [0], [1], [0, 0, 1, 1], [], []>} : vector<8x32xbf16>, vector<32x256xbf16>, vector<8x256xf32> -> vector<8x256xf32>
    %c0_4 = arith.constant 0 : index
    %c0_5 = arith.constant 0 : index
    %11 = vector.load %arg3[%c0_4, %c0_5] : memref<1x256xf32, #tpu.memory_space<vmem>>, vector<1x256xf32>
    %12 = vector.broadcast %11 : vector<1x256xf32> to vector<8x256xf32>
    %13 = arith.addf %10, %12 : vector<8x256xf32>
    %cst_6 = arith.constant 0.000000e+00 : f32
    %14 = vector.broadcast %cst_6 : f32 to vector<8x256xf32>
    %15 = arith.maximumf %13, %14 : vector<8x256xf32>
    %16 = arith.truncf %15 : vector<8x256xf32> to vector<8x256xbf16>
    %c0_7 = arith.constant 0 : index
    %c0_8 = arith.constant 0 : index
    %17 = vector.load %arg4[%c0_7, %c0_8] : memref<256x256xbf16, #tpu.memory_space<vmem>>, vector<256x256xbf16>
    %cst_9 = arith.constant dense<0.000000e+00> : vector<8x256xf32>
    %18 = tpu.matmul %16, %17, %cst_9 {dimension_numbers = #tpu.dot_dimension_numbers<[1], [0], [0], [1], [0, 0, 1, 1], [], []>} : vector<8x256xbf16>, vector<256x256xbf16>, vector<8x256xf32> -> vector<8x256xf32>
    %c0_10 = arith.constant 0 : index
    %c0_11 = arith.constant 0 : index
    %19 = vector.load %arg5[%c0_10, %c0_11] : memref<1x256xf32, #tpu.memory_space<vmem>>, vector<1x256xf32>
    %20 = vector.broadcast %19 : vector<1x256xf32> to vector<8x256xf32>
    %21 = arith.addf %18, %20 : vector<8x256xf32>
    %cst_12 = arith.constant 0.000000e+00 : f32
    %22 = vector.broadcast %cst_12 : f32 to vector<8x256xf32>
    %23 = arith.maximumf %21, %22 : vector<8x256xf32>
    %24 = arith.truncf %23 : vector<8x256xf32> to vector<8x256xbf16>
    %c0_13 = arith.constant 0 : index
    %c0_14 = arith.constant 0 : index
    %25 = vector.load %arg6[%c0_13, %c0_14] : memref<256x128xbf16, #tpu.memory_space<vmem>>, vector<256x128xbf16>
    %cst_15 = arith.constant dense<0.000000e+00> : vector<8x128xf32>
    %26 = tpu.matmul %24, %25, %cst_15 {dimension_numbers = #tpu.dot_dimension_numbers<[1], [0], [0], [1], [0, 0, 1, 1], [], []>} : vector<8x256xbf16>, vector<256x128xbf16>, vector<8x128xf32> -> vector<8x128xf32>
    %c0_16 = arith.constant 0 : index
    %c0_17 = arith.constant 0 : index
    %27 = vector.load %arg7[%c0_16, %c0_17] : memref<1x128xf32, #tpu.memory_space<vmem>>, vector<1x128xf32>
    %28 = vector.broadcast %27 : vector<1x128xf32> to vector<8x128xf32>
    %29 = arith.addf %26, %28 : vector<8x128xf32>
    %30 = tpu.iota {dimensions = array<i32: 1>} : vector<8x128xi32>
    %cst_18 = arith.constant -2.000000e+01 : f32
    %cst_19 = arith.constant 2.000000e+00 : f32
    %31 = vector.broadcast %cst_18 : f32 to vector<8x128xf32>
    %32 = arith.maximumf %31, %29 : vector<8x128xf32>
    %33 = vector.broadcast %cst_19 : f32 to vector<8x128xf32>
    %34 = arith.minimumf %33, %32 : vector<8x128xf32>
    %35 = math.exp %34 : vector<8x128xf32>
    %c8_i32 = arith.constant 8 : i32
    %36 = vector.broadcast %c8_i32 : i32 to vector<8x128xi32>
    %37 = arith.cmpi sge, %30, %36 : vector<8x128xi32>
    %38 = arith.select %37, %35, %29 : vector<8x128xi1>, vector<8x128xf32>
    %c0_20 = arith.constant 0 : index
    %c0_21 = arith.constant 0 : index
    %39 = vector.load %arg8[%c0_20, %c0_21] : memref<8x128xf32, #tpu.memory_space<vmem>>, vector<8x128xf32>
    tpu.vector_store %arg8[%c0_20, %c0_21], %38 {strides = array<i32>} : memref<8x128xf32, #tpu.memory_space<vmem>>, vector<8x128xf32>,
    return
  }
  func.func @transform_0(%arg0: i32) -> (i32, i32) {
    %c0_i32 = arith.constant 0 : i32
    %c0_i32_0 = arith.constant 0 : i32
    return %arg0, %c0_i32 : i32, i32
  }
  func.func @transform_1(%arg0: i32) -> (i32, i32) {
    %c0_i32 = arith.constant 0 : i32
    %c0_i32_0 = arith.constant 0 : i32
    %c0_i32_1 = arith.constant 0 : i32
    return %c0_i32, %c0_i32_0 : i32, i32
  }
  func.func @transform_2(%arg0: i32) -> (i32, i32) {
    %c0_i32 = arith.constant 0 : i32
    %c0_i32_0 = arith.constant 0 : i32
    %c0_i32_1 = arith.constant 0 : i32
    return %c0_i32, %c0_i32_0 : i32, i32
  }
  func.func @transform_3(%arg0: i32) -> (i32, i32) {
    %c0_i32 = arith.constant 0 : i32
    %c0_i32_0 = arith.constant 0 : i32
    %c0_i32_1 = arith.constant 0 : i32
    return %c0_i32, %c0_i32_0 : i32, i32
  }
  func.func @transform_4(%arg0: i32) -> (i32, i32) {
    %c0_i32 = arith.constant 0 : i32
    %c0_i32_0 = arith.constant 0 : i32
    %c0_i32_1 = arith.constant 0 : i32
    return %c0_i32, %c0_i32_0 : i32, i32
  }
  func.func @transform_5(%arg0: i32) -> (i32, i32) {
    %c0_i32 = arith.constant 0 : i32
    %c0_i32_0 = arith.constant 0 : i32
    %c0_i32_1 = arith.constant 0 : i32
    return %c0_i32, %c0_i32_0 : i32, i32
  }
  func.func @transform_6(%arg0: i32) -> (i32, i32) {
    %c0_i32 = arith.constant 0 : i32
    %c0_i32_0 = arith.constant 0 : i32
    %c0_i32_1 = arith.constant 0 : i32
    return %c0_i32, %c0_i32_0 : i32, i32
  }
  func.func @transform_7(%arg0: i32) -> (i32, i32) {
    %c0_i32 = arith.constant 0 : i32
    %c0_i32_0 = arith.constant 0 : i32
    return %arg0, %c0_i32 : i32, i32
  }
}

</mosaic_0001>

<llo_original>
// kernel: tpu_custom_call.1
$region0: #{tpu_custom_call.1}
  #allocation0 [shape = 'u32[]', space=smem, size = 0x4, offset = 0x4, fixed_abs, tag = 'smem constant byte address 0x4 - core index']
  #allocation1 [shape = 'u32[144,128]{1,0:T(1,128)}', space=vmem, size = 0x12000, scoped, tag = 'internal scratch']
  %s0 = inlined_call_operand.hbm [shape: f32[8,32], index: 0, kind: input, shape index: {}]
  %s1 = inlined_call_operand.hbm [shape: bf16[32,256], index: 1, kind: input, shape index: {}]
  %s2 = inlined_call_operand.vmem [shape: f32[1,256], index: 2, kind: input, shape index: {}]
  %s3 = inlined_call_operand.hbm [shape: bf16[256,256], index: 3, kind: input, shape index: {}]
  %s4 = inlined_call_operand.vmem [shape: f32[1,256], index: 4, kind: input, shape index: {}]
  %s5 = inlined_call_operand.hbm [shape: bf16[256,128], index: 5, kind: input, shape index: {}]
  %s6 = inlined_call_operand.vmem [shape: f32[1,128], index: 6, kind: input, shape index: {}]
  %s7 = inlined_call_operand.hbm [shape: f32[8,128], index: 7, kind: output, shape index: {}]
  %s8 = sld [smem:[#allocation0]]
  $region54: #{tpu_custom_call.1} parent=0
    _
  %s10 = ssub.s32 1, %s8
  %s11 = scalar_select 0, %s10, %s8
  $region1: #{tpu_custom_call.1} parent=0
    #allocation2 [shape = 'u8[4096]{0}', space=vmem, size = 0x1000, scoped, tag = 'input window, operand 0, single buffered']
    #allocation3 [shape = 's32[1]{0}', space=sflag, size = 0x4, scoped, tag = 'scoped memory for tpu_custom_call.1']
    #allocation4 [shape = 's32[1]{0}', space=sflag, size = 0x4, scoped, tag = 'scoped memory for tpu_custom_call.1']
    #allocation5 [shape = 'u8[16384]{0}', space=vmem, size = 0x4000, scoped, tag = 'input window, operand 1, single buffered']
    #allocation6 [shape = 's32[1]{0}', space=sflag, size = 0x4, scoped, tag = 'scoped memory for tpu_custom_call.1']
    #allocation7 [shape = 'u8[131072]{0}', space=vmem, size = 0x20000, scoped, tag = 'input window, operand 3, single buffered']
    #allocation8 [shape = 'u8[65536]{0}', space=vmem, size = 0x10000, scoped, tag = 'input window, operand 5, single buffered']
    #allocation9 [shape = 's32[1]{0}', space=sflag, size = 0x4, scoped, tag = 'scoped memory for tpu_custom_call.1']
    #allocation10 [shape = 'u8[4096]{0}', space=vmem, size = 0x1000, scoped, tag = 'output window, operand 0, single buffered']
    %12 = vsyncpa [#allocation3], 0
    %13 = vsyncpa [#allocation6], 0
    %14 = vsyncpa [#allocation9], 0
    %15 = vsyncpa [#allocation4], 0
    // Predicated region
    $region2: #{tpu_custom_call.1} parent=1 // pred_check
      _
    $region3: #{tpu_custom_call.1} parent=1 // pred_check_branch
      %17 = sbr.rel (0) target = $region5
    $region4: #{tpu_custom_call.1} parent=1 // pred_region
      %s19 = ssub.s32 128, 128
      %20 = vsyncadd [#allocation3], %s19
      %s22 = sshll.u32 [#allocation2], 4
      %s23 = int_to_ptr.vmem [resolvable:$true] %s22
      %25 = dma.hbm_to_vmem [thread:$0]  %s0, 128, %s23, [#allocation3]
    $region5: #{tpu_custom_call.1} parent=1 // pred_fallthru
      _
    // Predicated region
    $region6: #{tpu_custom_call.1} parent=1 // pred_check
      _
    $region7: #{tpu_custom_call.1} parent=1 // pred_check_branch
      %27 = sbr.rel (0) target = $region9
    $region8: #{tpu_custom_call.1} parent=1 // pred_region
      %s29 = ssub.s32 512, 512
      %30 = vsyncadd [#allocation6], %s29
      %s31 = sshll.u32 [#allocation5], 4
      %s32 = int_to_ptr.vmem [resolvable:$true] %s31
      %37 = dma.hbm_to_vmem [thread:$0]  %s1, 512, %s32, [#allocation6], 128, 128, 8
    $region9: #{tpu_custom_call.1} parent=1 // pred_fallthru
      _
    // Predicated region
    $region10: #{tpu_custom_call.1} parent=1 // pred_check
      _
    $region11: #{tpu_custom_call.1} parent=1 // pred_check_branch
      %39 = sbr.rel (0) target = $region13
    $region12: #{tpu_custom_call.1} parent=1 // pred_region
      _
    $region13: #{tpu_custom_call.1} parent=1 // pred_fallthru
      _
    // Predicated region
    $region14: #{tpu_custom_call.1} parent=1 // pred_check
      _
    $region15: #{tpu_custom_call.1} parent=1 // pred_check_branch
      %41 = sbr.rel (0) target = $region17
    $region16: #{tpu_custom_call.1} parent=1 // pred_region
      %s43 = ssub.s32 4096, 4096
      %44 = vsyncadd [#allocation6], %s43
      %s45 = sshll.u32 [#allocation7], 4
      %s46 = int_to_ptr.vmem [resolvable:$true] %s45
      %51 = dma.hbm_to_vmem [thread:$0]  %s3, 4096, %s46, [#allocation6], 128, 128, 8
    $region17: #{tpu_custom_call.1} parent=1 // pred_fallthru
      _
    // Predicated region
    $region18: #{tpu_custom_call.1} parent=1 // pred_check
      _
    $region19: #{tpu_custom_call.1} parent=1 // pred_check_branch
      %53 = sbr.rel (0) target = $region21
    $region20: #{tpu_custom_call.1} parent=1 // pred_region
      _
    $region21: #{tpu_custom_call.1} parent=1 // pred_fallthru
      _
    // Predicated region
    $region22: #{tpu_custom_call.1} parent=1 // pred_check
      _
    $region23: #{tpu_custom_call.1} parent=1 // pred_check_branch
      %55 = sbr.rel (0) target = $region25
    $region24: #{tpu_custom_call.1} parent=1 // pred_region
      %s57 = ssub.s32 2048, 2048
      %58 = vsyncadd [#allocation9], %s57
      %s59 = sshll.u32 [#allocation8], 4
      %s60 = int_to_ptr.vmem [resolvable:$true] %s59
      %65 = dma.hbm_to_vmem [thread:$0]  %s5, 2048, %s60, [#allocation9], 64, 64, 4
    $region25: #{tpu_custom_call.1} parent=1 // pred_fallthru
      _
    // Predicated region
    $region26: #{tpu_custom_call.1} parent=1 // pred_check
      _
    $region27: #{tpu_custom_call.1} parent=1 // pred_check_branch
      %67 = sbr.rel (0) target = $region29
    $region28: #{tpu_custom_call.1} parent=1 // pred_region
      _
    $region29: #{tpu_custom_call.1} parent=1 // pred_fallthru
      _
    // Predicated region
    $region30: #{tpu_custom_call.1} parent=1 // pred_check
      _
    $region31: #{tpu_custom_call.1} parent=1 // pred_check_branch
      %69 = sbr.rel (0) target = $region33
    $region32: #{tpu_custom_call.1} parent=1 // pred_region
      %70 = dma.done [#allocation3], 128
    $region33: #{tpu_custom_call.1} parent=1 // pred_fallthru
      _
    // Predicated region
    $region34: #{tpu_custom_call.1} parent=1 // pred_check
      _
    $region35: #{tpu_custom_call.1} parent=1 // pred_check_branch
      %72 = sbr.rel (0) target = $region37
    $region36: #{tpu_custom_call.1} parent=1 // pred_region
      %73 = dma.done [#allocation6], 512
    $region37: #{tpu_custom_call.1} parent=1 // pred_fallthru
      _
    // Predicated region
    $region38: #{tpu_custom_call.1} parent=1 // pred_check
      _
    $region39: #{tpu_custom_call.1} parent=1 // pred_check_branch
      %75 = sbr.rel (0) target = $region41
    $region40: #{tpu_custom_call.1} parent=1 // pred_region
      %76 = dma.done [#allocation6], 4096
    $region41: #{tpu_custom_call.1} parent=1 // pred_fallthru
      _
    // Predicated region
    $region42: #{tpu_custom_call.1} parent=1 // pred_check
      _
    $region43: #{tpu_custom_call.1} parent=1 // pred_check_branch
      %78 = sbr.rel (0) target = $region45
    $region44: #{tpu_custom_call.1} parent=1 // pred_region
      %79 = dma.done [#allocation9], 2048
    $region45: #{tpu_custom_call.1} parent=1 // pred_fallthru
      _
    %v81 = vld [vmem:[#allocation2] sm:$0xff]
    %v82 = vlaneseq
    %v83 = vand.u32 %v82, 127
    %vm84 = vcmp.ge.s32.totalorder %v83, 24
    %v85 = vmul.f32 %v81, 5.0
    %v86 = vtanh.pop %v85
    %v87 = vsel %vm84, %v86, %v81
    %v88 = vpack.c.bf16 %v87, %v87
    %v89 = vld [vmem:[#allocation5] sm:$0xff]
    %v90 = vld [vmem:[#allocation5 + $0x8] sm:$0xff]
    %v91 = vld [vmem:[#allocation5 + $0x10] sm:$0xff]
    %v92 = vld [vmem:[#allocation5 + $0x18] sm:$0xff]
    %v93 = vld [vmem:[%s2] sm:$0x3]
    %v95 = vlaneseq
    %v96 = vshrl.u32 %v95, 7
    %v97 = vsub.s32 0, %v96
    %v98 = vrot.slane %v93, %v97
    %v99 = vlaneseq
    %v100 = vshrl.u32 %v99, 7
    %v101 = vsub.s32 1, %v100
    %v102 = vrot.slane %v93, %v101
    %v109 = vunpack.c.l.b16 %v89
    %v110 = vunpack.c.h.b16 %v89
    %v111 = vunpack.c.l.b16 %v90
    %v112 = vunpack.c.h.b16 %v90
    %v113 = vunpack.c.l.b16 %v91
    %v114 = vunpack.c.h.b16 %v91
    %v115 = vunpack.c.l.b16 %v92
    %v116 = vunpack.c.h.b16 %v92
    %v117 = vpack.c.b16 %v111, %v109
    %v118 = vpack.c.b16 %v112, %v110
    %v119 = vpack.c.b16 %v115, %v113
    %v120 = vpack.c.b16 %v116, %v114
    %vm125 = vcmask 261120
    %v127 = vsel %vm125, %v88, 0
    %129 = vmatprep.subr.bf16.mxu0 %v118
    %130 = vmatpush1.bf16.msra.mxu0 %v117
    %131 = vmatprep.subr.bf16.mxu0 %v120
    %132 = vmatpush1.bf16.msra.mxu0 %v119
    %133 = vmatprep.subr.bf16.mxu0 0
    %134 = vmatpush1.bf16.msra.mxu0 0
    %135 = vmatprep.subr.bf16.mxu0 0
    %136 = vmatpush1.bf16.msra.mxu0 0
    %137 = vmatprep.subr.bf16.mxu0 0
    %138 = vmatpush1.bf16.msra.mxu0 0
    %139 = vmatprep.subr.bf16.mxu0 0
    %140 = vmatpush1.bf16.msra.mxu0 0
    %141 = vmatprep.subr.bf16.mxu0 0
    %142 = vmatpush1.bf16.msra.mxu0 0
    %143 = vmatprep.subr.bf16.mxu0 0
    %144 = vmatpush1.bf16.msra.mxu0 0
    %145 = vmatprep.subr.bf16.mxu0 0
    %146 = vmatpush1.bf16.msra.mxu0 0
    %147 = vmatprep.subr.bf16.mxu0 0
    %148 = vmatpush1.bf16.msra.mxu0 0
    %149 = vmatprep.subr.bf16.mxu0 0
    %150 = vmatpush1.bf16.msra.mxu0 0
    %151 = vmatprep.subr.bf16.mxu0 0
    %152 = vmatpush1.bf16.msra.mxu0 0
    %153 = vmatprep.subr.bf16.mxu0 0
    %154 = vmatpush1.bf16.msra.mxu0 0
    %155 = vmatprep.subr.bf16.mxu0 0
    %156 = vmatpush1.bf16.msra.mxu0 0
    %157 = vmatprep.subr.bf16.mxu0 0
    %158 = vmatpush1.bf16.msra.mxu0 0
    %159 = vmatprep.subr.bf16.mxu0 0
    %160 = vmatpush1.bf16.msra.mxu0 0
    %161 = vmatprep.mubr.bf16.mxu0 0
    %162 = vmatmul.mubr.bf16.gmra.mrb[0].mxu0 %v127
    %v163 = vpop.f32.mrb[0].mxu0
    %v164 = vadd.f32 %v98, %v163
    %v165 = vpop.f32.mrb[0].mxu0
    %v166 = vadd.f32 %v102, %v165
    %v167 = vpop.f32.mrb[0].mxu0
    %v168 = vpop.f32.mrb[0].mxu0
    %169 = vdwg.mxu0
    %v170 = vmax.f32 %v164, 0.0
    %v171 = vmax.f32 %v166, 0.0
    %v172 = vpack.c.bf16 %v170, %v170
    %v173 = vpack.c.bf16 %v171, %v171
    %v174 = vld [vmem:[#allocation7] sm:$0xff]
    %v175 = vld [vmem:[#allocation7 + $0x8] sm:$0xff]
    %v176 = vld [vmem:[#allocation7 + $0x10] sm:$0xff]
    %v177 = vld [vmem:[#allocation7 + $0x18] sm:$0xff]
    %v178 = vld [vmem:[#allocation7 + $0x20] sm:$0xff]
    %v179 = vld [vmem:[#allocation7 + $0x28] sm:$0xff]
    %v180 = vld [vmem:[#allocation7 + $0x30] sm:$0xff]
    %v181 = vld [vmem:[#allocation7 + $0x38] sm:$0xff]
    %v182 = vld [vmem:[#allocation7 + $0x40] sm:$0xff]
    %v183 = vld [vmem:[#allocation7 + $0x48] sm:$0xff]
    %v184 = vld [vmem:[#allocation7 + $0x50] sm:$0xff]
    %v185 = vld [vmem:[#allocation7 + $0x58] sm:$0xff]
    %v186 = vld [vmem:[#allocation7 + $0x60] sm:$0xff]
    %v187 = vld [vmem:[#allocation7 + $0x68] sm:$0xff]
    %v188 = vld [vmem:[#allocation7 + $0x70] sm:$0xff]
    %v189 = vld [vmem:[#allocation7 + $0x78] sm:$0xff]
    %v190 = vld [vmem:[#allocation7 + $0x80] sm:$0xff]
    %v191 = vld [vmem:[#allocation7 + $0x88] sm:$0xff]
    %v192 = vld [vmem:[#allocation7 + $0x90] sm:$0xff]
    %v193 = vld [vmem:[#allocation7 + $0x98] sm:$0xff]
    %v194 = vld [vmem:[#allocation7 + $0xa0] sm:$0xff]
    %v195 = vld [vmem:[#allocation7 + $0xa8] sm:$0xff]
    %v196 = vld [vmem:[#allocation7 + $0xb0] sm:$0xff]
    %v197 = vld [vmem:[#allocation7 + $0xb8] sm:$0xff]
    %v198 = vld [vmem:[#allocation7 + $0xc0] sm:$0xff]
    %v199 = vld [vmem:[#allocation7 + $0xc8] sm:$0xff]
    %v200 = vld [vmem:[#allocation7 + $0xd0] sm:$0xff]
    %v201 = vld [vmem:[#allocation7 + $0xd8] sm:$0xff]
    %v202 = vld [vmem:[#allocation7 + $0xe0] sm:$0xff]
    %v203 = vld [vmem:[#allocation7 + $0xe8] sm:$0xff]
    %v204 = vld [vmem:[#allocation7 + $0xf0] sm:$0xff]
    %v205 = vld [vmem:[#allocation7 + $0xf8] sm:$0xff]
    %v206 = vld [vmem:[%s4] sm:$0x3]
    %v208 = vlaneseq
    %v209 = vshrl.u32 %v208, 7
    %v210 = vsub.s32 0, %v209
    %v211 = vrot.slane %v206, %v210
    %v212 = vlaneseq
    %v213 = vshrl.u32 %v212, 7
    %v214 = vsub.s32 1, %v213
    %v215 = vrot.slane %v206, %v214
    %v250 = vunpack.c.l.b16 %v174
    %v251 = vunpack.c.h.b16 %v174
    %v252 = vunpack.c.l.b16 %v175
    %v253 = vunpack.c.h.b16 %v175
    %v254 = vunpack.c.l.b16 %v176
    %v255 = vunpack.c.h.b16 %v176
    %v256 = vunpack.c.l.b16 %v177
    %v257 = vunpack.c.h.b16 %v177
    %v258 = vunpack.c.l.b16 %v178
    %v259 = vunpack.c.h.b16 %v178
    %v260 = vunpack.c.l.b16 %v179
    %v261 = vunpack.c.h.b16 %v179
    %v262 = vunpack.c.l.b16 %v180
    %v263 = vunpack.c.h.b16 %v180
    %v264 = vunpack.c.l.b16 %v181
    %v265 = vunpack.c.h.b16 %v181
    %v266 = vunpack.c.l.b16 %v182
    %v267 = vunpack.c.h.b16 %v182
    %v268 = vunpack.c.l.b16 %v183
    %v269 = vunpack.c.h.b16 %v183
    %v270 = vunpack.c.l.b16 %v184
    %v271 = vunpack.c.h.b16 %v184
    %v272 = vunpack.c.l.b16 %v185
    %v273 = vunpack.c.h.b16 %v185
    %v274 = vunpack.c.l.b16 %v186
    %v275 = vunpack.c.h.b16 %v186
    %v276 = vunpack.c.l.b16 %v187
    %v277 = vunpack.c.h.b16 %v187
    %v278 = vunpack.c.l.b16 %v188
    %v279 = vunpack.c.h.b16 %v188
    %v280 = vunpack.c.l.b16 %v189
    %v281 = vunpack.c.h.b16 %v189
    %v282 = vunpack.c.l.b16 %v190
    %v283 = vunpack.c.h.b16 %v190
    %v284 = vunpack.c.l.b16 %v191
    %v285 = vunpack.c.h.b16 %v191
    %v286 = vunpack.c.l.b16 %v192
    %v287 = vunpack.c.h.b16 %v192
    %v288 = vunpack.c.l.b16 %v193
    %v289 = vunpack.c.h.b16 %v193
    %v290 = vunpack.c.l.b16 %v194
    %v291 = vunpack.c.h.b16 %v194
    %v292 = vunpack.c.l.b16 %v195
    %v293 = vunpack.c.h.b16 %v195
    %v294 = vunpack.c.l.b16 %v196
    %v295 = vunpack.c.h.b16 %v196
    %v296 = vunpack.c.l.b16 %v197
    %v297 = vunpack.c.h.b16 %v197
    %v298 = vunpack.c.l.b16 %v198
    %v299 = vunpack.c.h.b16 %v198
    %v300 = vunpack.c.l.b16 %v199
    %v301 = vunpack.c.h.b16 %v199
    %v302 = vunpack.c.l.b16 %v200
    %v303 = vunpack.c.h.b16 %v200
    %v304 = vunpack.c.l.b16 %v201
    %v305 = vunpack.c.h.b16 %v201
    %v306 = vunpack.c.l.b16 %v202
    %v307 = vunpack.c.h.b16 %v202
    %v308 = vunpack.c.l.b16 %v203
    %v309 = vunpack.c.h.b16 %v203
    %v310 = vunpack.c.l.b16 %v204
    %v311 = vunpack.c.h.b16 %v204
    %v312 = vunpack.c.l.b16 %v205
    %v313 = vunpack.c.h.b16 %v205
    %v314 = vpack.c.b16 %v252, %v250
    %v315 = vpack.c.b16 %v253, %v251
    %v316 = vpack.c.b16 %v256, %v254
    %v317 = vpack.c.b16 %v257, %v255
    %v318 = vpack.c.b16 %v260, %v258
    %v319 = vpack.c.b16 %v261, %v259
    %v320 = vpack.c.b16 %v264, %v262
    %v321 = vpack.c.b16 %v265, %v263
    %v322 = vpack.c.b16 %v268, %v266
    %v323 = vpack.c.b16 %v269, %v267
    %v324 = vpack.c.b16 %v272, %v270
    %v325 = vpack.c.b16 %v273, %v271
    %v326 = vpack.c.b16 %v276, %v274
    %v327 = vpack.c.b16 %v277, %v275
    %v328 = vpack.c.b16 %v280, %v278
    %v329 = vpack.c.b16 %v281, %v279
    %v330 = vpack.c.b16 %v284, %v282
    %v331 = vpack.c.b16 %v285, %v283
    %v332 = vpack.c.b16 %v288, %v286
    %v333 = vpack.c.b16 %v289, %v287
    %v334 = vpack.c.b16 %v292, %v290
    %v335 = vpack.c.b16 %v293, %v291
    %v336 = vpack.c.b16 %v296, %v294
    %v337 = vpack.c.b16 %v297, %v295
    %v338 = vpack.c.b16 %v300, %v298
    %v339 = vpack.c.b16 %v301, %v299
    %v340 = vpack.c.b16 %v304, %v302
    %v341 = vpack.c.b16 %v305, %v303
    %v342 = vpack.c.b16 %v308, %v306
    %v343 = vpack.c.b16 %v309, %v307
    %v344 = vpack.c.b16 %v312, %v310
    %v345 = vpack.c.b16 %v313, %v311
    %378 = vmatprep.subr.bf16.mxu0 %v315
    %379 = vmatpush1.bf16.msra.mxu0 %v314
    %380 = vmatprep.subr.bf16.mxu0 %v317
    %381 = vmatpush1.bf16.msra.mxu0 %v316
    %382 = vmatprep.subr.bf16.mxu0 %v319
    %383 = vmatpush1.bf16.msra.mxu0 %v318
    %384 = vmatprep.subr.bf16.mxu0 %v321
    %385 = vmatpush1.bf16.msra.mxu0 %v320
    %386 = vmatprep.subr.bf16.mxu0 %v323
    %387 = vmatpush1.bf16.msra.mxu0 %v322
    %388 = vmatprep.subr.bf16.mxu0 %v325
    %389 = vmatpush1.bf16.msra.mxu0 %v324
    %390 = vmatprep.subr.bf16.mxu0 %v327
    %391 = vmatpush1.bf16.msra.mxu0 %v326
    %392 = vmatprep.subr.bf16.mxu0 %v329
    %393 = vmatpush1.bf16.msra.mxu0 %v328
    %394 = vmatprep.subr.bf16.mxu0 %v331
    %395 = vmatpush1.bf16.msra.mxu0 %v330
    %396 = vmatprep.subr.bf16.mxu0 %v333
    %397 = vmatpush1.bf16.msra.mxu0 %v332
    %398 = vmatprep.subr.bf16.mxu0 %v335
    %399 = vmatpush1.bf16.msra.mxu0 %v334
    %400 = vmatprep.subr.bf16.mxu0 %v337
    %401 = vmatpush1.bf16.msra.mxu0 %v336
    %402 = vmatprep.subr.bf16.mxu0 %v339
    %403 = vmatpush1.bf16.msra.mxu0 %v338
    %404 = vmatprep.subr.bf16.mxu0 %v341
    %405 = vmatpush1.bf16.msra.mxu0 %v340
    %406 = vmatprep.subr.bf16.mxu0 %v343
    %407 = vmatpush1.bf16.msra.mxu0 %v342
    %408 = vmatprep.subr.bf16.mxu0 %v345
    %409 = vmatpush1.bf16.msra.mxu0 %v344
    %410 = vmatprep.mubr.bf16.mxu0 %v173
    %411 = vmatmul.mubr.bf16.gmra.mrb[0].mxu0 %v172
    %v412 = vpop.f32.mrb[0].mxu0
    %v413 = vadd.f32 %v211, %v412
    %v414 = vpop.f32.mrb[0].mxu0
    %v415 = vadd.f32 %v215, %v414
    %v416 = vpop.f32.mrb[0].mxu0
    %v417 = vpop.f32.mrb[0].mxu0
    %418 = vdwg.mxu0
    %v419 = vmax.f32 %v413, 0.0
    %v420 = vmax.f32 %v415, 0.0
    %v421 = vpack.c.bf16 %v419, %v419
    %v422 = vpack.c.bf16 %v420, %v420
    %v423 = vld [vmem:[#allocation8] sm:$0xf]
    %v424 = vld [vmem:[#allocation8 + $0x4] sm:$0xf]
    %v425 = vld [vmem:[#allocation8 + $0x8] sm:$0xf]
    %v426 = vld [vmem:[#allocation8 + $0xc] sm:$0xf]
    %v427 = vld [vmem:[#allocation8 + $0x10] sm:$0xf]
    %v428 = vld [vmem:[#allocation8 + $0x14] sm:$0xf]
    %v429 = vld [vmem:[#allocation8 + $0x18] sm:$0xf]
    %v430 = vld [vmem:[#allocation8 + $0x1c] sm:$0xf]
    %v431 = vld [vmem:[#allocation8 + $0x20] sm:$0xf]
    %v432 = vld [vmem:[#allocation8 + $0x24] sm:$0xf]
    %v433 = vld [vmem:[#allocation8 + $0x28] sm:$0xf]
    %v434 = vld [vmem:[#allocation8 + $0x2c] sm:$0xf]
    %v435 = vld [vmem:[#allocation8 + $0x30] sm:$0xf]
    %v436 = vld [vmem:[#allocation8 + $0x34] sm:$0xf]
    %v437 = vld [vmem:[#allocation8 + $0x38] sm:$0xf]
    %v438 = vld [vmem:[#allocation8 + $0x3c] sm:$0xf]
    %v439 = vld [vmem:[#allocation8 + $0x40] sm:$0xf]
    %v440 = vld [vmem:[#allocation8 + $0x44] sm:$0xf]
    %v441 = vld [vmem:[#allocation8 + $0x48] sm:$0xf]
    %v442 = vld [vmem:[#allocation8 + $0x4c] sm:$0xf]
    %v443 = vld [vmem:[#allocation8 + $0x50] sm:$0xf]
    %v444 = vld [vmem:[#allocation8 + $0x54] sm:$0xf]
    %v445 = vld [vmem:[#allocation8 + $0x58] sm:$0xf]
    %v446 = vld [vmem:[#allocation8 + $0x5c] sm:$0xf]
    %v447 = vld [vmem:[#allocation8 + $0x60] sm:$0xf]
    %v448 = vld [vmem:[#allocation8 + $0x64] sm:$0xf]
    %v449 = vld [vmem:[#allocation8 + $0x68] sm:$0xf]
    %v450 = vld [vmem:[#allocation8 + $0x6c] sm:$0xf]
    %v451 = vld [vmem:[#allocation8 + $0x70] sm:$0xf]
    %v452 = vld [vmem:[#allocation8 + $0x74] sm:$0xf]
    %v453 = vld [vmem:[#allocation8 + $0x78] sm:$0xf]
    %v454 = vld [vmem:[#allocation8 + $0x7c] sm:$0xf]
    %v455 = vld [vmem:[%s6] sm:$0x1]
    %v457 = vlaneseq
    %v458 = vshrl.u32 %v457, 7
    %v459 = vsub.s32 0, %v458
    %v460 = vrot.slane %v455, %v459
    %v494 = vunpack.c.l.b16 %v423
    %v495 = vunpack.c.l.b16 %v424
    %v496 = vunpack.c.l.b16 %v425
    %v497 = vunpack.c.l.b16 %v426
    %v498 = vunpack.c.l.b16 %v427
    %v499 = vunpack.c.l.b16 %v428
    %v500 = vunpack.c.l.b16 %v429
    %v501 = vunpack.c.l.b16 %v430
    %v502 = vunpack.c.l.b16 %v431
    %v503 = vunpack.c.l.b16 %v432
    %v504 = vunpack.c.l.b16 %v433
    %v505 = vunpack.c.l.b16 %v434
    %v506 = vunpack.c.l.b16 %v435
    %v507 = vunpack.c.l.b16 %v436
    %v508 = vunpack.c.l.b16 %v437
    %v509 = vunpack.c.l.b16 %v438
    %v510 = vunpack.c.l.b16 %v439
    %v511 = vunpack.c.l.b16 %v440
    %v512 = vunpack.c.l.b16 %v441
    %v513 = vunpack.c.l.b16 %v442
    %v514 = vunpack.c.l.b16 %v443
    %v515 = vunpack.c.l.b16 %v444
    %v516 = vunpack.c.l.b16 %v445
    %v517 = vunpack.c.l.b16 %v446
    %v518 = vunpack.c.l.b16 %v447
    %v519 = vunpack.c.l.b16 %v448
    %v520 = vunpack.c.l.b16 %v449
    %v521 = vunpack.c.l.b16 %v450
    %v522 = vunpack.c.l.b16 %v451
    %v523 = vunpack.c.l.b16 %v452
    %v524 = vunpack.c.l.b16 %v453
    %v525 = vunpack.c.l.b16 %v454
    %v526 = vpack.c.b16 %v495, %v494
    %v527 = vpack.c.b16 %v497, %v496
    %v528 = vpack.c.b16 %v499, %v498
    %v529 = vpack.c.b16 %v501, %v500
    %v530 = vpack.c.b16 %v503, %v502
    %v531 = vpack.c.b16 %v505, %v504
    %v532 = vpack.c.b16 %v507, %v506
    %v533 = vpack.c.b16 %v509, %v508
    %v534 = vpack.c.b16 %v511, %v510
    %v535 = vpack.c.b16 %v513, %v512
    %v536 = vpack.c.b16 %v515, %v514
    %v537 = vpack.c.b16 %v517, %v516
    %v538 = vpack.c.b16 %v519, %v518
    %v539 = vpack.c.b16 %v521, %v520
    %v540 = vpack.c.b16 %v523, %v522
    %v541 = vpack.c.b16 %v525, %v524
    %558 = vmatprep.subr.bf16.mxu0 0
    %559 = vmatpush1.bf16.msra.mxu0 %v526
    %560 = vmatprep.subr.bf16.mxu0 0
    %561 = vmatpush1.bf16.msra.mxu0 %v527
    %562 = vmatprep.subr.bf16.mxu0 0
    %563 = vmatpush1.bf16.msra.mxu0 %v528
    %564 = vmatprep.subr.bf16.mxu0 0
    %565 = vmatpush1.bf16.msra.mxu0 %v529
    %566 = vmatprep.subr.bf16.mxu0 0
    %567 = vmatpush1.bf16.msra.mxu0 %v530
    %568 = vmatprep.subr.bf16.mxu0 0
    %569 = vmatpush1.bf16.msra.mxu0 %v531
    %570 = vmatprep.subr.bf16.mxu0 0
    %571 = vmatpush1.bf16.msra.mxu0 %v532
    %572 = vmatprep.subr.bf16.mxu0 0
    %573 = vmatpush1.bf16.msra.mxu0 %v533
    %574 = vmatprep.subr.bf16.mxu0 0
    %575 = vmatpush1.bf16.msra.mxu0 %v534
    %576 = vmatprep.subr.bf16.mxu0 0
    %577 = vmatpush1.bf16.msra.mxu0 %v535
    %578 = vmatprep.subr.bf16.mxu0 0
    %579 = vmatpush1.bf16.msra.mxu0 %v536
    %580 = vmatprep.subr.bf16.mxu0 0
    %581 = vmatpush1.bf16.msra.mxu0 %v537
    %582 = vmatprep.subr.bf16.mxu0 0
    %583 = vmatpush1.bf16.msra.mxu0 %v538
    %584 = vmatprep.subr.bf16.mxu0 0
    %585 = vmatpush1.bf16.msra.mxu0 %v539
    %586 = vmatprep.subr.bf16.mxu0 0
    %587 = vmatpush1.bf16.msra.mxu0 %v540
    %588 = vmatprep.subr.bf16.mxu0 0
    %589 = vmatpush1.bf16.msra.mxu0 %v541
    %590 = vmatprep.mubr.bf16.mxu0 %v422
    %591 = vmatmul.mubr.bf16.gmra.mrb[0].mxu0 %v421
    %v592 = vpop.f32.mrb[0].mxu0
    %v593 = vadd.f32 %v460, %v592
    %v594 = vpop.f32.mrb[0].mxu0
    %v595 = vpop.f32.mrb[0].mxu0
    %v596 = vpop.f32.mrb[0].mxu0
    %597 = vdwg.mxu0
    %v598 = vmax.f32 %v593, -20.0
    %v599 = vmin.f32 %v598, 2.0
    %v600 = vmul.f32 %v599, 1.442695
    %v601 = vpow.pop %v600
    %vm602 = vcmp.ge.s32.totalorder %v83, 8
    %v603 = vsel %vm602, %v601, %v593
    %604 = vst [vmem:[#allocation10] sm:$0xff] %v603
    // Predicated region
    $region46: #{tpu_custom_call.1} parent=1 // pred_check
      _
    $region47: #{tpu_custom_call.1} parent=1 // pred_check_branch
      %606 = sbr.rel (0) target = $region49
    $region48: #{tpu_custom_call.1} parent=1 // pred_region
      %s608 = ssub.s32 128, 128
      %609 = vsyncadd [#allocation4], %s608
      %s611 = sshll.u32 [#allocation10], 4
      %s612 = int_to_ptr.vmem [resolvable:$true] %s611
      %614 = dma.vmem_to_hbm [thread:$0]  %s612, 128, %s7, [#allocation4]
    $region49: #{tpu_custom_call.1} parent=1 // pred_fallthru
      _
    // Predicated region
    $region50: #{tpu_custom_call.1} parent=1 // pred_check
      _
    $region51: #{tpu_custom_call.1} parent=1 // pred_check_branch
      %616 = sbr.rel (0) target = $region53
    $region52: #{tpu_custom_call.1} parent=1 // pred_region
      %617 = dma.done [#allocation4], 128
    $region53: #{tpu_custom_call.1} parent=1 // pred_fallthru
      _
    %618 = vsyncpa [#allocation3], 1
    %619 = vsyncpa [#allocation6], 1
    %620 = vsyncpa [#allocation9], 1
    %621 = vsyncpa [#allocation4], 1

</llo_original>
